<compile_context>
chip_gen: v5e
topology: v5e:2x2
jax: 0.10.0
libtpu: 0.0.40
codegen_flags: <defaults>
</compile_context>

<pallas_src>
import functools

import jax
import jax.numpy as jnp
from jax import lax
from jax.experimental import pallas as pl
from jax.experimental.pallas import tpu as pltpu


def _resblock_kernel(xpad_ref, w_ref, o_ref, *, wp2, pw):
    """One batch element per grid step.

    xpad_ref : (C, Sp)    zero-padded input, channel-major, spatial flattened
                          at padded width (Sp = (H+3)*(W+2); lanes = spatial).
    w_ref    : (Co, 9*C)  weight slab, column (kh*3+kw)*C + ci == w[co,ci,kh,kw].
    o_ref    : (Co, PW)   conv output at padded width (PW = H*(W+2)); the two
                          junk columns per row are cropped by the wrapper.
    """
    # 9 conv taps = 9 contiguous lane windows of the flattened padded input.
    windows = []
    for kh in range(3):
        for kw in range(3):
            off = kh * wp2 + kw
            windows.append(xpad_ref[:, off:off + pw])          # (C, PW)

    # im2col slab (9*C, PW) -> single matmul on the MXU, f32 accumulation.
    im2col = jnp.concatenate(windows, axis=0)                  # (9*C, PW)
    acc = jnp.dot(w_ref[...], im2col,
                  preferred_element_type=jnp.float32)          # (Co, PW)

    # Residual = interior of the padded input = the center-tap window
    # (requires Co == C, asserted in the wrapper).
    residual = windows[4]                                      # (C, PW)

    o_ref[...] = (jnp.maximum(acc, 0.0)
                  + residual.astype(jnp.float32)).astype(o_ref.dtype)


def res_block_2d(x_nchw, w_oihw, *, vmem_limit_bytes=32 * 1024 * 1024):
    """x_nchw: (N, C, H, W); w_oihw: (Co, Ci, 3, 3) (PyTorch layouts)."""
    N, C, H, W = x_nchw.shape
    Co = w_oihw.shape[0]
    assert C == Co, "residual add requires in_channels == out_channels"
    assert w_oihw.shape[1:] == (C, 3, 3)

    wp2 = W + 2                 # padded width
    pw = H * wp2                # output length at padded width
    sp = (H + 3) * wp2          # flattened padded input length
                                # (1 top pad row + 2 bottom pad rows so every
                                #  tap window stays strictly in bounds)

    # Single padded input stream; NCHW is already channel-major -> no transpose.
    xpad = jnp.pad(x_nchw, ((0, 0), (0, 0), (1, 2), (1, 1))).reshape(N, C, sp)

    # Single lane-dense 2-D weight slab, resident across the whole grid.
    w2 = jnp.transpose(w_oihw, (0, 2, 3, 1)).reshape(Co, 9 * C)

    kernel = functools.partial(_resblock_kernel, wp2=wp2, pw=pw)

    # TODO(synk): for large H*W / C, add a row-tile grid axis with a 1-row halo
    # (unblocked indexing or manual DMA) plus a Co tile axis to bound per-step
    # VMEM and keep v7x's second TensorCore busy when N is small.
    out = pl.pallas_call(
        kernel,
        out_shape=jax.ShapeDtypeStruct((N, Co, pw), x_nchw.dtype),
        grid=(N,),
        in_specs=[
            pl.BlockSpec((None, C, sp), lambda n: (n, 0, 0)),
            pl.BlockSpec((Co, 9 * C), lambda n: (0, 0)),   # constant -> resident
        ],
        out_specs=pl.BlockSpec((None, Co, pw), lambda n: (n, 0, 0)),
        compiler_params=pltpu.CompilerParams(
            dimension_semantics=("parallel",),
            vmem_limit_bytes=vmem_limit_bytes,
        ),
    )(xpad, w2)

    # (N, Co, H*(W+2)) -> (N, Co, H, W+2) -> crop 2 junk columns -> NCHW out.
    return out.reshape(N, Co, H, wp2)[:, :, :, :W]


def reference(x_nchw, w_oihw):
    conv = lax.conv_general_dilated(
        x_nchw, w_oihw, window_strides=(1, 1), padding=((1, 1), (1, 1)),
        dimension_numbers=("NCHW", "OIHW", "NCHW"))
    return jnp.maximum(conv, 0.0) + x_nchw


if __name__ == "__main__":
    # Small shapes consistent with the module: batch=2, channels=4, 16x16 spatial.
    N, C, H, W = 2, 4, 16, 16
    Co = C  # residual add requires matching channels

    key = jax.random.PRNGKey(0)
    kx, kw = jax.random.split(key)
    x = jax.random.normal(kx, (N, C, H, W), dtype=jnp.float32)

    # Deterministic init mimicking nn.Conv2d default (uniform +/- 1/sqrt(fan_in)).
    fan_in = C * 3 * 3
    bound = 1.0 / (fan_in ** 0.5)
    w = jax.random.uniform(kw, (Co, C, 3, 3), dtype=jnp.float32,
                           minval=-bound, maxval=bound)

    out = res_block_2d(x, w)
    jax.block_until_ready(out)

    ref = reference(x, w)
    assert out.shape == (N, Co, H, W)
    assert jnp.allclose(out, ref, atol=1e-4, rtol=1e-4), "mismatch vs reference"

    print("KERNEL_OK")
</pallas_src>

<mosaic_0001>
module attributes {stable_mosaic.version = 11 : i64} {
  func.func @_resblock_kernel(%arg0: i32, %arg1: memref<1x4x342xf32, #tpu.memory_space<vmem>>, %arg2: memref<4x36xf32, #tpu.memory_space<vmem>>, %arg3: memref<1x4x288xf32, #tpu.memory_space<vmem>>) attributes {dimension_semantics = [#tpu.dimension_semantics<parallel>], iteration_bounds = array<i64: 2>, scalar_prefetch = 0 : i64, scratch_operands = 0 : i64, tpu.core_type = #tpu.core_type<tc>, window_params = [{transform_indices = @transform_0, window_bounds = array<i64: 1, 4, 342>}, {pipeline_mode = #tpu.pipeline_mode<synchronous>, transform_indices = @transform_1, window_bounds = array<i64: 4, 36>}, {transform_indices = @transform_2, window_bounds = array<i64: 1, 4, 288>}]} {
    %c0 = arith.constant 0 : index
    %c0_0 = arith.constant 0 : index
    %c0_1 = arith.constant 0 : index
    %0 = vector.load %arg1[%c0, %c0_0, %c0_1] : memref<1x4x342xf32, #tpu.memory_space<vmem>>, vector<1x4x288xf32>
    %1 = vector.shape_cast %0 : vector<1x4x288xf32> to vector<4x288xf32>
    %c0_2 = arith.constant 0 : index
    %c0_3 = arith.constant 0 : index
    %c1 = arith.constant 1 : index
    %2 = vector.load %arg1[%c0_2, %c0_3, %c1] : memref<1x4x342xf32, #tpu.memory_space<vmem>>, vector<1x4x288xf32>
    %3 = vector.shape_cast %2 : vector<1x4x288xf32> to vector<4x288xf32>
    %c0_4 = arith.constant 0 : index
    %c0_5 = arith.constant 0 : index
    %c2 = arith.constant 2 : index
    %4 = vector.load %arg1[%c0_4, %c0_5, %c2] : memref<1x4x342xf32, #tpu.memory_space<vmem>>, vector<1x4x288xf32>
    %5 = vector.shape_cast %4 : vector<1x4x288xf32> to vector<4x288xf32>
    %c0_6 = arith.constant 0 : index
    %c0_7 = arith.constant 0 : index
    %c18 = arith.constant 18 : index
    %6 = vector.load %arg1[%c0_6, %c0_7, %c18] : memref<1x4x342xf32, #tpu.memory_space<vmem>>, vector<1x4x288xf32>
    %7 = vector.shape_cast %6 : vector<1x4x288xf32> to vector<4x288xf32>
    %c0_8 = arith.constant 0 : index
    %c0_9 = arith.constant 0 : index
    %c19 = arith.constant 19 : index
    %8 = vector.load %arg1[%c0_8, %c0_9, %c19] : memref<1x4x342xf32, #tpu.memory_space<vmem>>, vector<1x4x288xf32>
    %9 = vector.shape_cast %8 : vector<1x4x288xf32> to vector<4x288xf32>
    %c0_10 = arith.constant 0 : index
    %c0_11 = arith.constant 0 : index
    %c20 = arith.constant 20 : index
    %10 = vector.load %arg1[%c0_10, %c0_11, %c20] : memref<1x4x342xf32, #tpu.memory_space<vmem>>, vector<1x4x288xf32>
    %11 = vector.shape_cast %10 : vector<1x4x288xf32> to vector<4x288xf32>
    %c0_12 = arith.constant 0 : index
    %c0_13 = arith.constant 0 : index
    %c36 = arith.constant 36 : index
    %12 = vector.load %arg1[%c0_12, %c0_13, %c36] : memref<1x4x342xf32, #tpu.memory_space<vmem>>, vector<1x4x288xf32>
    %13 = vector.shape_cast %12 : vector<1x4x288xf32> to vector<4x288xf32>
    %c0_14 = arith.constant 0 : index
    %c0_15 = arith.constant 0 : index
    %c37 = arith.constant 37 : index
    %14 = vector.load %arg1[%c0_14, %c0_15, %c37] : memref<1x4x342xf32, #tpu.memory_space<vmem>>, vector<1x4x288xf32>
    %15 = vector.shape_cast %14 : vector<1x4x288xf32> to vector<4x288xf32>
    %c0_16 = arith.constant 0 : index
    %c0_17 = arith.constant 0 : index
    %c38 = arith.constant 38 : index
    %16 = vector.load %arg1[%c0_16, %c0_17, %c38] : memref<1x4x342xf32, #tpu.memory_space<vmem>>, vector<1x4x288xf32>
    %17 = vector.shape_cast %16 : vector<1x4x288xf32> to vector<4x288xf32>
    %18 = tpu.concatenate %1, %3, %5, %7, %9, %11, %13, %15, %17 in 0 : vector<4x288xf32>, vector<4x288xf32>, vector<4x288xf32>, vector<4x288xf32>, vector<4x288xf32>, vector<4x288xf32>, vector<4x288xf32>, vector<4x288xf32>, vector<4x288xf32> -> vector<36x288xf32>
    %c0_18 = arith.constant 0 : index
    %c0_19 = arith.constant 0 : index
    %19 = vector.load %arg2[%c0_18, %c0_19] : memref<4x36xf32, #tpu.memory_space<vmem>>, vector<4x36xf32>
    %cst = arith.constant dense<0.000000e+00> : vector<4x288xf32>
    %20 = tpu.matmul %19, %18, %cst {dimension_numbers = #tpu.dot_dimension_numbers<[1], [0], [0], [1], [0, 0, 1, 1], [], []>} : vector<4x36xf32>, vector<36x288xf32>, vector<4x288xf32> -> vector<4x288xf32>
    %cst_20 = arith.constant 0.000000e+00 : f32
    %21 = vector.broadcast %cst_20 : f32 to vector<4x288xf32>
    %22 = arith.maximumf %20, %21 : vector<4x288xf32>
    %23 = arith.addf %22, %9 : vector<4x288xf32>
    %c0_21 = arith.constant 0 : index
    %c0_22 = arith.constant 0 : index
    %c0_23 = arith.constant 0 : index
    %24 = vector.load %arg3[%c0_21, %c0_22, %c0_23] : memref<1x4x288xf32, #tpu.memory_space<vmem>>, vector<1x4x288xf32>
    %25 = vector.shape_cast %24 : vector<1x4x288xf32> to vector<4x288xf32>
    %26 = vector.shape_cast %23 : vector<4x288xf32> to vector<1x4x288xf32>
    tpu.vector_store %arg3[%c0_21, %c0_22, %c0_23], %26 {strides = array<i32>} : memref<1x4x288xf32, #tpu.memory_space<vmem>>, vector<1x4x288xf32>,
    return
  }
  func.func @transform_0(%arg0: i32) -> (i32, i32, i32) {
    %c0_i32 = arith.constant 0 : i32
    %c0_i32_0 = arith.constant 0 : i32
    %c0_i32_1 = arith.constant 0 : i32
    return %arg0, %c0_i32, %c0_i32_0 : i32, i32, i32
  }
  func.func @transform_1(%arg0: i32) -> (i32, i32) {
    %c0_i32 = arith.constant 0 : i32
    %c0_i32_0 = arith.constant 0 : i32
    %c0_i32_1 = arith.constant 0 : i32
    return %c0_i32, %c0_i32_0 : i32, i32
  }
  func.func @transform_2(%arg0: i32) -> (i32, i32, i32) {
    %c0_i32 = arith.constant 0 : i32
    %c0_i32_0 = arith.constant 0 : i32
    %c0_i32_1 = arith.constant 0 : i32
    return %arg0, %c0_i32, %c0_i32_0 : i32, i32, i32
  }
}

</mosaic_0001>

<llo_original>
// kernel: tpu_custom_call.1
$region0: #{tpu_custom_call.1}
  #allocation0 [shape = 'u32[]', space=smem, size = 0x4, offset = 0x4, fixed_abs, tag = 'smem constant byte address 0x4 - core index']
  #allocation1 [shape = 'u32[72,128]{1,0:T(1,128)}', space=vmem, size = 0x9000, scoped, tag = 'internal scratch']
  %s0 = inlined_call_operand.hbm [shape: f32[2,4,342], index: 0, kind: input, shape index: {}]
  %s1 = inlined_call_operand.hbm [shape: f32[4,36], index: 1, kind: input, shape index: {}]
  %s2 = inlined_call_operand.hbm [shape: f32[2,4,288], index: 2, kind: output, shape index: {}]
  %s3 = sld [smem:[#allocation0]]
  $region49: #{tpu_custom_call.1} parent=0
    _
  %s5 = ssub.s32 1, %s3
  %s6 = scalar_select 0, %s5, %s3
  $region1: #{tpu_custom_call.1} parent=0
    #allocation2 [shape = 'u8[12288]{0}', space=vmem, size = 0x3000, scoped, tag = 'input window, operand 0']
    #allocation3 [shape = 's32[2]{0}', space=sflag, size = 0x8, scoped, tag = 'scoped memory for tpu_custom_call.1']
    #allocation4 [shape = 's32[2]{0}', space=sflag, size = 0x8, scoped, tag = 'scoped memory for tpu_custom_call.1']
    #allocation5 [shape = 'u8[2048]{0}', space=vmem, size = 0x800, scoped, tag = 'input window, operand 1, single buffered']
    #allocation6 [shape = 's32[1]{0}', space=sflag, size = 0x4, scoped, tag = 'scoped memory for tpu_custom_call.1']
    #allocation7 [shape = 'u8[12288]{0}', space=vmem, size = 0x3000, scoped, tag = 'output window, operand 0']
    %7 = vsyncpa [#allocation3], 0
    %s8 = scalar_lea.sflag [#allocation3], 1
    %9 = vsyncpa %s8, 0
    %10 = vsyncpa [#allocation6], 0
    %11 = vsyncpa [#allocation4], 0
    %s12 = scalar_lea.sflag [#allocation4], 1
    %13 = vsyncpa %s12, 0
    loop: start=0, step=1, limit=4
    $region2: #{tpu_custom_call.1} parent=1 // loop_pre_header
      _
    $region3: #{tpu_custom_call.1} parent=1 // loop_header
      %s15 = sphi 0, %s19
      %p16 = scmp.ge.s32.totalorder %s15, 4
      %s25 = sphi 0, %s27
      %s28 = sphi 0, %s25
      %s29 = sphi 0, %s28
      %s45 = sphi 0, %s29
      %s49 = sphi 0, %s49
      %s51 = sphi 0, %s49
      %s52 = sphi 0, %s51
      %s66 = sphi 0, %s52
      %s72 = sphi 0, %s74
      %s75 = sphi 0, %s72
      %s76 = sphi 0, %s75
      %s92 = sphi 0, %s76
    $region4: #{tpu_custom_call.1} parent=1 // loop_header_branch
      %18 = sbr.rel (%p16) target = $region8
    $region5: #{tpu_custom_call.1} parent=1 // loop_body
      %s20 = ssub.s32 %s15, 1
      %s21 = ssub.s32 %s15, 2
      %s22 = sadd.s32 %s15, 1
      %s23 = ssub.s32 %s15, %s22
      %p24 = scmp.eq.s32.totalorder %s23, 0
      %s26 = sadd.s32 %s25, 1
      %s27 = scalar_select %p24, %s25, %s26
      %p30 = pneg %p24
      %p31 = scmp.eq.s32.totalorder %s15, 1
      %p32 = por %p30, %p31
      %p33 = scmp.ne.s32.totalorder %s25, %s28
      %p34 = scmp.eq.s32.totalorder %s15, 0
      %p35 = por %p33, %p34
      %p36 = scmp.ne.s32.totalorder %s25, %s28
      %p37 = scmp.eq.s32.totalorder %s20, 1
      %p38 = por %p36, %p37
      %p39 = scmp.ne.s32.totalorder %s28, %s29
      %p40 = scmp.eq.s32.totalorder %s20, 0
      %p41 = por %p39, %p40
      %p42 = scmp.ne.s32.totalorder %s28, %s29
      %p43 = scmp.eq.s32.totalorder %s21, 1
      %p44 = por %p42, %p43
      %p46 = scmp.ne.s32.totalorder %s29, %s45
      %p47 = scmp.eq.s32.totalorder %s21, 0
      %p48 = por %p46, %p47
      %s50 = sadd.s32 %s49, 1
      %p53 = scmp.eq.s32.totalorder %s15, 1
      %p54 = scmp.ne.s32.totalorder %s49, %s51
      %p55 = scmp.eq.s32.totalorder %s15, 0
      %p56 = por %p54, %p55
      %p57 = scmp.ne.s32.totalorder %s49, %s51
      %p58 = scmp.eq.s32.totalorder %s20, 1
      %p59 = por %p57, %p58
      %p60 = scmp.ne.s32.totalorder %s51, %s52
      %p61 = scmp.eq.s32.totalorder %s20, 0
      %p62 = por %p60, %p61
      %p63 = scmp.ne.s32.totalorder %s51, %s52
      %p64 = scmp.eq.s32.totalorder %s21, 1
      %p65 = por %p63, %p64
      %p67 = scmp.ne.s32.totalorder %s52, %s66
      %p68 = scmp.eq.s32.totalorder %s21, 0
      %p69 = por %p67, %p68
      %s70 = ssub.s32 %s15, %s22
      %p71 = scmp.eq.s32.totalorder %s70, 0
      %s73 = sadd.s32 %s72, 1
      %s74 = scalar_select %p71, %s72, %s73
      %p77 = pneg %p71
      %p78 = scmp.eq.s32.totalorder %s15, 1
      %p79 = por %p77, %p78
      %p80 = scmp.ne.s32.totalorder %s72, %s75
      %p81 = scmp.eq.s32.totalorder %s15, 0
      %p82 = por %p80, %p81
      %p83 = scmp.ne.s32.totalorder %s72, %s75
      %p84 = scmp.eq.s32.totalorder %s20, 1
      %p85 = por %p83, %p84
      %p86 = scmp.ne.s32.totalorder %s75, %s76
      %p87 = scmp.eq.s32.totalorder %s20, 0
      %p88 = por %p86, %p87
      %p89 = scmp.ne.s32.totalorder %s75, %s76
      %p90 = scmp.eq.s32.totalorder %s21, 1
      %p91 = por %p89, %p90
      %p93 = scmp.ne.s32.totalorder %s76, %s92
      %p94 = scmp.eq.s32.totalorder %s21, 0
      %p95 = por %p93, %p94
      %p96 = scmp.le.s32.totalorder 1, %s15
      %p97 = scmp.lt.s32.totalorder %s15, 3
      %p98 = pnand %p96, %p97
      %p99 = pneg %p98
      // Predicated region
      $region9: #{tpu_custom_call.1} parent=5 // pred_check
        _
      $region10: #{tpu_custom_call.1} parent=5 // pred_check_branch
        %101 = sbr.rel (%p98) target = $region12
      $region11: #{tpu_custom_call.1} parent=5 // pred_region
        %s102 = ssub.s32 %s15, 1
        // Predicated region
        $region13: #{tpu_custom_call.1} parent=11 // pred_check
          %p103 = pneg %p62
        $region14: #{tpu_custom_call.1} parent=11 // pred_check_branch
          %105 = sbr.rel (%p103) target = $region16
        $region15: #{tpu_custom_call.1} parent=11 // pred_region
          %107 = vsyncadd [#allocation6], 0
          %s109 = sshll.u32 %s1, 4
          %s110 = int_to_ptr.hbm [resolvable:$true] %s109
          %s111 = sshll.u32 [#allocation5], 4
          %s112 = int_to_ptr.vmem [resolvable:$true] %s111
          %114 = dma.hbm_to_vmem [thread:$0]  %s110, 64, %s112, [#allocation6]
        $region16: #{tpu_custom_call.1} parent=11 // pred_fallthru
          _
      $region12: #{tpu_custom_call.1} parent=5 // pred_fallthru
        _
      %p115 = scmp.lt.s32.totalorder %s15, 2
      // Predicated region
      $region17: #{tpu_custom_call.1} parent=5 // pred_check
        %p116 = pneg %p115
      $region18: #{tpu_custom_call.1} parent=5 // pred_check_branch
        %118 = sbr.rel (%p116) target = $region20
      $region19: #{tpu_custom_call.1} parent=5 // pred_region
        // Predicated region
        $region21: #{tpu_custom_call.1} parent=19 // pred_check
          %p119 = pneg %p35
        $region22: #{tpu_custom_call.1} parent=19 // pred_check_branch
          %121 = sbr.rel (%p119) target = $region24
        $region23: #{tpu_custom_call.1} parent=19 // pred_region
          %s122 = sand.u32 %s25, 1
          %s123 = scalar_lea.sflag [#allocation3], %s122
          %s124 = sand.u32 %s25, 1
          %s125 = smul.addr %s124, 12
          %s126 = scalar_lea.vmem [#allocation2], %s125
          %128 = vsyncadd %s123, 0
          %s129 = smul.addr %s15, 3
          %s130 = smul.addr %s129, 4
          %s131 = scalar_lea.hbm %s0, %s130
          %s133 = sshll.u32 %s131, 4
          %s134 = int_to_ptr.hbm [resolvable:$true] %s133
          %s135 = sshll.u32 %s126, 4
          %s136 = int_to_ptr.vmem [resolvable:$true] %s135
          %138 = dma.hbm_to_vmem [thread:$0]  %s134, 192, %s136, %s123
        $region24: #{tpu_custom_call.1} parent=19 // pred_fallthru
          _
      $region20: #{tpu_custom_call.1} parent=5 // pred_fallthru
        _
      %p139 = scmp.le.s32.totalorder 1, %s15
      %p140 = scmp.lt.s32.totalorder %s15, 3
      %p141 = pnand %p139, %p140
      %p142 = pneg %p141
      // Predicated region
      $region25: #{tpu_custom_call.1} parent=5 // pred_check
        _
      $region26: #{tpu_custom_call.1} parent=5 // pred_check_branch
        %144 = sbr.rel (%p141) target = $region28
      $region27: #{tpu_custom_call.1} parent=5 // pred_region
        %s145 = ssub.s32 %s15, 1
        %s146 = sand.u32 %s28, 1
        %s147 = scalar_lea.sflag [#allocation3], %s146
        %s148 = sand.u32 %s28, 1
        %s149 = smul.addr %s148, 12
        %s150 = scalar_lea.vmem [#allocation2], %s149
        // Predicated region
        $region29: #{tpu_custom_call.1} parent=27 // pred_check
          %p151 = pneg %p41
        $region30: #{tpu_custom_call.1} parent=27 // pred_check_branch
          %153 = sbr.rel (%p151) target = $region32
        $region31: #{tpu_custom_call.1} parent=27 // pred_region
          %155 = dma.done %s147, 192
        $region32: #{tpu_custom_call.1} parent=27 // pred_fallthru
          _
        // Predicated region
        $region33: #{tpu_custom_call.1} parent=27 // pred_check
          %p156 = pneg %p62
        $region34: #{tpu_custom_call.1} parent=27 // pred_check_branch
          %158 = sbr.rel (%p156) target = $region36
        $region35: #{tpu_custom_call.1} parent=27 // pred_region
          %160 = dma.done [#allocation6], 64
        $region36: #{tpu_custom_call.1} parent=27 // pred_fallthru
          _
        %s161 = sand.u32 %s28, 1
        %s162 = scalar_lea.sflag [#allocation3], %s161
        %s163 = sand.u32 %s28, 1
        %s164 = smul.addr %s163, 12
        %s165 = scalar_lea.vmem [#allocation2], %s164
        %p166 = pneg %p41
        %p167 = pneg %p38
        %p168 = pneg %p62
        %p169 = pneg %p59
        %p170 = pneg %p88
        %p171 = pneg %p85
        %s172 = sand.u32 %s75, 1
        %s173 = scalar_lea.sflag [#allocation4], %s172
        %s174 = sand.u32 %s75, 1
        %s175 = smul.addr %s174, 12
        %s176 = scalar_lea.vmem [#allocation7], %s175
        %v177 = vld [vmem:[%s150] sm:$0xff]
        %v178 = vld [vmem:[%s150 + $0x8] sm:$0xf]
        %181 = vst [vmem:[#allocation1] ss:$2 sm:$0xff] %v177
        %s182 = scalar_lea.vmem [#allocation1], 16
        %183 = vst [vmem:[%s182] ss:$2 sm:$0xff] %v178
        %v184 = vld.sshfl [vmem:[#allocation1] sm:$0xff pattern:$0x75316420]
        %v185 = vld.sshfl [vmem:[#allocation1 + $0x8] sm:$0xff pattern:$0x75316420]
        %v186 = vld.sshfl [vmem:[#allocation1 + $0x10] sm:$0xff pattern:$0x75316420]
        %s190 = scalar_lea.vmem [#allocation1], 1
        %191 = vst [vmem:[%s190] ss:$2 sm:$0xff] %v177
        %s192 = scalar_lea.vmem [#allocation1], 17
        %193 = vst [vmem:[%s192] ss:$2 sm:$0xff] %v178
        %v194 = vld.sshfl [vmem:[#allocation1] sm:$0xff pattern:$0x75316420]
        %v195 = vld.sshfl [vmem:[#allocation1 + $0x8] sm:$0xff pattern:$0x75316420]
        %v196 = vld.sshfl [vmem:[#allocation1 + $0x10] sm:$0xff pattern:$0x75316420]
        %197 = vrot.lane.b32.xlu0 %v194, 127
        %v198 = vpop.permute.xlu0 %197
        %199 = vrot.lane.b32.xlu0 %v195, 127
        %v200 = vpop.permute.xlu0 %199
        %201 = vrot.lane.b32.xlu0 %v196, 127
        %v202 = vpop.permute.xlu0 %201
        %vm203 = vcmask 1039360
        %v204 = vsel %vm203, %v198, %v200
        %v205 = vsel %vm203, %v200, %v202
        %209 = vst [vmem:[#allocation1] ss:$2 sm:$0xff] %v177
        %s210 = scalar_lea.vmem [#allocation1], 16
        %211 = vst [vmem:[%s210] ss:$2 sm:$0xff] %v178
        %v212 = vld.sshfl [vmem:[#allocation1] sm:$0xff pattern:$0x75316420]
        %v213 = vld.sshfl [vmem:[#allocation1 + $0x8] sm:$0xff pattern:$0x75316420]
        %v214 = vld.sshfl [vmem:[#allocation1 + $0x10] sm:$0xff pattern:$0x75316420]
        %215 = vrot.lane.b32.xlu0 %v212, 126
        %v216 = vpop.permute.xlu0 %215
        %217 = vrot.lane.b32.xlu0 %v213, 126
        %v218 = vpop.permute.xlu0 %217
        %219 = vrot.lane.b32.xlu0 %v214, 126
        %v220 = vpop.permute.xlu0 %219
        %vm221 = vcmask 1031168
        %v222 = vsel %vm221, %v216, %v218
        %v223 = vsel %vm221, %v218, %v220
        %s227 = scalar_lea.vmem [#allocation1], 1
        %228 = vst [vmem:[%s227] ss:$2 sm:$0xff] %v177
        %s229 = scalar_lea.vmem [#allocation1], 17
        %230 = vst [vmem:[%s229] ss:$2 sm:$0xff] %v178
        %v231 = vld.sshfl [vmem:[#allocation1] sm:$0xff pattern:$0x75316420]
        %v232 = vld.sshfl [vmem:[#allocation1 + $0x8] sm:$0xff pattern:$0x75316420]
        %v233 = vld.sshfl [vmem:[#allocation1 + $0x10] sm:$0xff pattern:$0x75316420]
        %234 = vrot.lane.b32.xlu0 %v231, 110
        %v235 = vpop.permute.xlu0 %234
        %236 = vrot.lane.b32.xlu0 %v232, 110
        %v237 = vpop.permute.xlu0 %236
        %238 = vrot.lane.b32.xlu0 %v233, 110
        %v239 = vpop.permute.xlu0 %238
        %vm240 = vcmask 900096
        %v241 = vsel %vm240, %v235, %v237
        %v242 = vsel %vm240, %v237, %v239
        %246 = vst [vmem:[#allocation1] ss:$2 sm:$0xff] %v177
        %s247 = scalar_lea.vmem [#allocation1], 16
        %248 = vst [vmem:[%s247] ss:$2 sm:$0xff] %v178
        %v249 = vld.sshfl [vmem:[#allocation1] sm:$0xff pattern:$0x75316420]
        %v250 = vld.sshfl [vmem:[#allocation1 + $0x8] sm:$0xff pattern:$0x75316420]
        %v251 = vld.sshfl [vmem:[#allocation1 + $0x10] sm:$0xff pattern:$0x75316420]
        %252 = vrot.lane.b32.xlu0 %v249, 109
        %v253 = vpop.permute.xlu0 %252
        %254 = vrot.lane.b32.xlu0 %v250, 109
        %v255 = vpop.permute.xlu0 %254
        %256 = vrot.lane.b32.xlu0 %v251, 109
        %v257 = vpop.permute.xlu0 %256
        %vm258 = vcmask 891904
        %v259 = vsel %vm258, %v253, %v255
        %v260 = vsel %vm258, %v255, %v257
        %s264 = scalar_lea.vmem [#allocation1], 1
        %265 = vst [vmem:[%s264] ss:$2 sm:$0xff] %v177
        %s266 = scalar_lea.vmem [#allocation1], 17
        %267 = vst [vmem:[%s266] ss:$2 sm:$0xff] %v178
        %v268 = vld.sshfl [vmem:[#allocation1] sm:$0xff pattern:$0x75316420]
        %v269 = vld.sshfl [vmem:[#allocation1 + $0x8] sm:$0xff pattern:$0x75316420]
        %v270 = vld.sshfl [vmem:[#allocation1 + $0x10] sm:$0xff pattern:$0x75316420]
        %271 = vrot.lane.b32.xlu0 %v268, 108
        %v272 = vpop.permute.xlu0 %271
        %273 = vrot.lane.b32.xlu0 %v269, 108
        %v274 = vpop.permute.xlu0 %273
        %275 = vrot.lane.b32.xlu0 %v270, 108
        %v276 = vpop.permute.xlu0 %275
        %vm277 = vcmask 883712
        %v278 = vsel %vm277, %v272, %v274
        %v279 = vsel %vm277, %v274, %v276
        %283 = vst [vmem:[#allocation1] ss:$2 sm:$0xff] %v177
        %s284 = scalar_lea.vmem [#allocation1], 16
        %285 = vst [vmem:[%s284] ss:$2 sm:$0xff] %v178
        %v286 = vld.sshfl [vmem:[#allocation1] sm:$0xff pattern:$0x75316420]
        %v287 = vld.sshfl [vmem:[#allocation1 + $0x8] sm:$0xff pattern:$0x75316420]
        %v288 = vld.sshfl [vmem:[#allocation1 + $0x10] sm:$0xff pattern:$0x75316420]
        %289 = vrot.lane.b32.xlu0 %v286, 92
        %v290 = vpop.permute.xlu0 %289
        %291 = vrot.lane.b32.xlu0 %v287, 92
        %v292 = vpop.permute.xlu0 %291
        %293 = vrot.lane.b32.xlu0 %v288, 92
        %v294 = vpop.permute.xlu0 %293
        %vm295 = vcmask 752640
        %v296 = vsel %vm295, %v290, %v292
        %v297 = vsel %vm295, %v292, %v294
        %s301 = scalar_lea.vmem [#allocation1], 1
        %302 = vst [vmem:[%s301] ss:$2 sm:$0xff] %v177
        %s303 = scalar_lea.vmem [#allocation1], 17
        %304 = vst [vmem:[%s303] ss:$2 sm:$0xff] %v178
        %v305 = vld.sshfl [vmem:[#allocation1] sm:$0xff pattern:$0x75316420]
        %v306 = vld.sshfl [vmem:[#allocation1 + $0x8] sm:$0xff pattern:$0x75316420]
        %v307 = vld.sshfl [vmem:[#allocation1 + $0x10] sm:$0xff pattern:$0x75316420]
        %308 = vrot.lane.b32.xlu0 %v305, 91
        %v309 = vpop.permute.xlu0 %308
        %310 = vrot.lane.b32.xlu0 %v306, 91
        %v311 = vpop.permute.xlu0 %310
        %312 = vrot.lane.b32.xlu0 %v307, 91
        %v313 = vpop.permute.xlu0 %312
        %vm314 = vcmask 744448
        %v315 = vsel %vm314, %v309, %v311
        %v316 = vsel %vm314, %v311, %v313
        %320 = vst [vmem:[#allocation1] ss:$2 sm:$0xff] %v177
        %s321 = scalar_lea.vmem [#allocation1], 16
        %322 = vst [vmem:[%s321] ss:$2 sm:$0xff] %v178
        %v323 = vld.sshfl [vmem:[#allocation1] sm:$0xff pattern:$0x75316420]
        %v324 = vld.sshfl [vmem:[#allocation1 + $0x8] sm:$0xff pattern:$0x75316420]
        %v325 = vld.sshfl [vmem:[#allocation1 + $0x10] sm:$0xff pattern:$0x75316420]
        %326 = vrot.lane.b32.xlu0 %v323, 90
        %v327 = vpop.permute.xlu0 %326
        %328 = vrot.lane.b32.xlu0 %v324, 90
        %v329 = vpop.permute.xlu0 %328
        %330 = vrot.lane.b32.xlu0 %v325, 90
        %v331 = vpop.permute.xlu0 %330
        %vm332 = vcmask 736256
        %v333 = vsel %vm332, %v327, %v329
        %v334 = vsel %vm332, %v329, %v331
        %vm335 = vcmask 1043456
        %v336 = vsel %vm335, %v184, %v204
        %v337 = vsel %vm335, %v185, %v205
        %v338 = vsel %vm335, %v186, %v202
        %v339 = vsel %vm335, %v222, %v241
        %v340 = vsel %vm335, %v223, %v242
        %v341 = vsel %vm335, %v220, %v239
        %v342 = vsel %vm335, %v259, %v278
        %v343 = vsel %vm335, %v260, %v279
        %v344 = vsel %vm335, %v257, %v276
        %v345 = vsel %vm335, %v296, %v315
        %v346 = vsel %vm335, %v297, %v316
        %v347 = vsel %vm335, %v294, %v313
        %v348 = vld [vmem:[#allocation5] sm:$0xf]
        %vm349 = vcmask 293888
        %v351 = vsel %vm349, %v348, 0
        %v353 = vsel %vm335, %v333, 0
        %v355 = vsel %vm335, %v334, 0
        %v357 = vsel %vm335, %v331, 0
        %359 = vmatpush.msra.mxu0 0.0
        %360 = vmatpush.msra.mxu0 0.0
        %361 = vmatpush.msra.mxu0 0.0
        %362 = vmatpush.msra.mxu0 0.0
        %363 = vmatpush.msra.mxu0 0.0
        %364 = vmatpush.msra.mxu0 0.0
        %365 = vmatpush.msra.mxu0 0.0
        %366 = vmatpush.msra.mxu0 0.0
        %367 = vmatpush.msra.mxu0 0.0
        %368 = vmatpush.msra.mxu0 0.0
        %369 = vmatpush.msra.mxu0 0.0
        %370 = vmatpush.msra.mxu0 %v353
        %371 = vmatpush.msra.mxu0 %v345
        %372 = vmatpush.msra.mxu0 %v342
        %373 = vmatpush.msra.mxu0 %v339
        %374 = vmatpush.msra.mxu0 %v336
        %375 = vmatmul.f32.gmra.mxu0 %v351
        %v376 = vpop.f32.mrf.mxu0
        %v377 = vadd.f32 0.0, %v376
        %378 = vdwg.mxu0
        %379 = vmatpush.msra.mxu0 0.0
        %380 = vmatpush.msra.mxu0 0.0
        %381 = vmatpush.msra.mxu0 0.0
        %382 = vmatpush.msra.mxu0 0.0
        %383 = vmatpush.msra.mxu0 0.0
        %384 = vmatpush.msra.mxu0 0.0
        %385 = vmatpush.msra.mxu0 0.0
        %386 = vmatpush.msra.mxu0 0.0
        %387 = vmatpush.msra.mxu0 0.0
        %388 = vmatpush.msra.mxu0 0.0
        %389 = vmatpush.msra.mxu0 0.0
        %390 = vmatpush.msra.mxu0 %v355
        %391 = vmatpush.msra.mxu0 %v346
        %392 = vmatpush.msra.mxu0 %v343
        %393 = vmatpush.msra.mxu0 %v340
        %394 = vmatpush.msra.mxu0 %v337
        %395 = vmatmul.f32.gmra.mxu0 %v351
        %v396 = vpop.f32.mrf.mxu0
        %v397 = vadd.f32 0.0, %v396
        %398 = vdwg.mxu0
        %399 = vmatpush.msra.mxu0 0.0
        %400 = vmatpush.msra.mxu0 0.0
        %401 = vmatpush.msra.mxu0 0.0
        %402 = vmatpush.msra.mxu0 0.0
        %403 = vmatpush.msra.mxu0 0.0
        %404 = vmatpush.msra.mxu0 0.0
        %405 = vmatpush.msra.mxu0 0.0
        %406 = vmatpush.msra.mxu0 0.0
        %407 = vmatpush.msra.mxu0 0.0
        %408 = vmatpush.msra.mxu0 0.0
        %409 = vmatpush.msra.mxu0 0.0
        %410 = vmatpush.msra.mxu0 %v357
        %411 = vmatpush.msra.mxu0 %v347
        %412 = vmatpush.msra.mxu0 %v344
        %413 = vmatpush.msra.mxu0 %v341
        %414 = vmatpush.msra.mxu0 %v338
        %415 = vmatmul.f32.gmra.mxu0 %v351
        %v416 = vpop.f32.mrf.mxu0
        %v417 = vadd.f32 0.0, %v416
        %418 = vdwg.mxu0
        %v419 = vmax.f32 %v377, 0.0
        %v420 = vmax.f32 %v397, 0.0
        %v421 = vmax.f32 %v417, 0.0
        %422 = vst [vmem:[#allocation1] ss:$2 sm:$0xff] %v177
        %s423 = scalar_lea.vmem [#allocation1], 16
        %424 = vst [vmem:[%s423] ss:$2 sm:$0xff] %v178
        %v425 = vld.sshfl [vmem:[#allocation1] sm:$0xff pattern:$0x75316420]
        %v426 = vld.sshfl [vmem:[#allocation1 + $0x8] sm:$0xff pattern:$0x75316420]
        %v427 = vld.sshfl [vmem:[#allocation1 + $0x10] sm:$0xff pattern:$0x75316420]
        %428 = vrot.lane.b32.xlu0 %v425, 109
        %v429 = vpop.permute.xlu0 %428
        %430 = vrot.lane.b32.xlu0 %v426, 109
        %v431 = vpop.permute.xlu0 %430
        %432 = vrot.lane.b32.xlu0 %v427, 109
        %v433 = vpop.permute.xlu0 %432
        %v434 = vsel %vm258, %v429, %v431
        %v435 = vsel %vm258, %v431, %v433
        %v439 = vadd.f32 %v419, %v434
        %v440 = vadd.f32 %v420, %v435
        %v441 = vadd.f32 %v421, %v433
        %v444 = vrot.slane %v440, 4
        %v445 = vsel %vm335, %v439, %v444
        %447 = vst [vmem:[%s176] sm:$0xff] %v445
        %vm448 = vcmask 257024
        %449 = vst.msk [vmem:[%s176 + $0x8] sm:$0xf] %vm448, %v441
        %s450 = sand.u32 %s75, 1
        %s451 = scalar_lea.sflag [#allocation4], %s450
        %s452 = sand.u32 %s75, 1
        %s453 = smul.addr %s452, 12
        %s454 = scalar_lea.vmem [#allocation7], %s453
        // Predicated region
        $region37: #{tpu_custom_call.1} parent=27 // pred_check
          %p455 = pneg %p85
        $region38: #{tpu_custom_call.1} parent=27 // pred_check_branch
          %457 = sbr.rel (%p455) target = $region40
        $region39: #{tpu_custom_call.1} parent=27 // pred_region
          %459 = vsyncadd %s451, 0
          %s460 = smul.addr %s20, 3
          %s461 = smul.addr %s460, 4
          %s462 = scalar_lea.hbm %s2, %s461
          %s464 = sshll.u32 %s454, 4
          %s465 = int_to_ptr.vmem [resolvable:$true] %s464
          %s466 = sshll.u32 %s462, 4
          %s467 = int_to_ptr.hbm [resolvable:$true] %s466
          %469 = dma.vmem_to_hbm [thread:$0]  %s465, 192, %s467, %s451
        $region40: #{tpu_custom_call.1} parent=27 // pred_fallthru
          _
      $region28: #{tpu_custom_call.1} parent=5 // pred_fallthru
        _
      %p470 = scmp.le.s32.totalorder 2, %s15
      // Predicated region
      $region41: #{tpu_custom_call.1} parent=5 // pred_check
        %p471 = pneg %p470
      $region42: #{tpu_custom_call.1} parent=5 // pred_check_branch
        %473 = sbr.rel (%p471) target = $region44
      $region43: #{tpu_custom_call.1} parent=5 // pred_region
        %s474 = ssub.s32 %s15, 2
        // Predicated region
        $region45: #{tpu_custom_call.1} parent=43 // pred_check
          %p475 = pneg %p91
        $region46: #{tpu_custom_call.1} parent=43 // pred_check_branch
          %477 = sbr.rel (%p475) target = $region48
        $region47: #{tpu_custom_call.1} parent=43 // pred_region
          %s478 = sand.u32 %s76, 1
          %s479 = scalar_lea.sflag [#allocation4], %s478
          %s480 = sand.u32 %s76, 1
          %s481 = smul.addr %s480, 12
          %s482 = scalar_lea.vmem [#allocation7], %s481
          %484 = dma.done %s479, 192
        $region48: #{tpu_custom_call.1} parent=43 // pred_fallthru
          _
      $region44: #{tpu_custom_call.1} parent=5 // pred_fallthru
        _
    $region6: #{tpu_custom_call.1} parent=1 // loop_footer
      %s19 = sadd.s32 1, %s15
    $region7: #{tpu_custom_call.1} parent=1 // loop_footer_branch
      %14 = sbr.rel target = $region3
    $region8: #{tpu_custom_call.1} parent=1 // loop_exit
      _
    %485 = vsyncpa [#allocation3], 1
    %s486 = scalar_lea.sflag [#allocation3], 1
    %487 = vsyncpa %s486, 1
    %488 = vsyncpa [#allocation6], 1
    %489 = vsyncpa [#allocation4], 1
    %s490 = scalar_lea.sflag [#allocation4], 1
    %491 = vsyncpa %s490, 1

</llo_original>
